<compile_context>
chip_gen: v7x
topology: tpu7x:2x2x1
jax: 0.10.0
libtpu: 0.0.40
codegen_flags: <defaults>
</compile_context>

<pallas_src>
import functools

import jax
import jax.numpy as jnp
import numpy as np
from jax.experimental import pallas as pl
from jax.experimental.pallas import tpu as pltpu

_LANE = 128


def _pos_embed_kernel(x_ref, w_ref, o_ref):
    # x_ref: (TB, TC) slab of flattened activations.
    # w_ref: (1, TC) positional slab, broadcast over the batch rows.
    # Upcast on the VMEM tile so PyTorch's promotion (e.g. bf16 + f32 -> f32)
    # is honored without an extra HBM pass; a no-op when dtypes already match.
    o_ref[...] = x_ref[...].astype(o_ref.dtype) + w_ref[...].astype(o_ref.dtype)


def _sublane(itemsize):
    # Sub-32-bit dtypes pack along sublanes: 8 for f32, 16 for bf16, 32 for int8/fp8.
    return max(8, 32 // int(itemsize))


def _tile_budget_bytes():
    """Per-buffer tile budget, generation-aware (best effort)."""
    budget = 6 << 20  # safe everywhere given the explicit vmem_limit_bytes below
    try:
        info = pltpu.get_tpu_info()
        vmem = int(getattr(info, "vmem_capacity_bytes", 0) or 0)
        if 0 < vmem <= (80 << 20):
            # v7x-class chip (64 MiB VMEM, ~3.2 TB/s HBM): amortize per-step
            # overhead harder; the explicit vmem limit keeps this legal.
            budget = 8 << 20
    except Exception:
        pass
    return budget


def _pick_tiles(B, F, elem_bytes, budget, sub):
    """Return (TB, TC). TB is a sublane multiple or full-B; TC a 128-multiple or full-F."""
    tb_min = B if B < sub else sub
    # Column tile first: prefer the full flattened row (one contiguous DMA run per
    # row group; W_pos slab fetched once and resident); shrink to a 128-multiple
    # under the budget otherwise.  cdiv grids mask any partial edge block.
    if F <= _LANE or tb_min * F * elem_bytes <= budget:
        tc = F
    else:
        k = max(1, budget // (tb_min * _LANE * elem_bytes))
        tc = min(F, _LANE * int(k))
    # Row tile second: grow toward the budget in sublane multiples.
    tb = budget // (tc * elem_bytes)
    if tb >= B:
        tb = B                                  # full extent is always layout-legal
    else:
        tb = max(tb_min, (tb // sub) * sub)
        tb = min(tb, B)
    return int(tb), int(tc)


@functools.partial(jax.jit, static_argnames=("max_tile_bytes",))
def pos_embed(x, w_pos, *, max_tile_bytes=None):
    """x: (..., S, D), w_pos: (max_ctx, D)  ->  x + w_pos[:S] (PyTorch promotion)."""
    *lead, S, D = x.shape
    B = int(np.prod(lead)) if lead else 1
    F = S * D

    out_dtype = jnp.result_type(x.dtype, w_pos.dtype)
    x_item = np.dtype(x.dtype).itemsize
    o_item = np.dtype(out_dtype).itemsize
    w_item = np.dtype(w_pos.dtype).itemsize

    budget = int(max_tile_bytes) if max_tile_bytes is not None else _tile_budget_bytes()
    sub = _sublane(x_item)
    # Size tiles with the widest per-element footprint so both the x tile and the
    # (possibly promoted) out tile individually respect the budget.
    TB, TC = _pick_tiles(B, F, max(x_item, o_item), budget, sub)

    n_col = pl.cdiv(F, TC)
    n_row = pl.cdiv(B, TB)

    # Lane-dense flattening: the last dim the kernel sees is S*D (a large multiple
    # of 128 in practice even when d_model is small) -> unmasked vector stores.
    x2 = x.reshape(B, F)
    w2 = w_pos[:S].reshape(1, F)

    if n_col == 1:
        # Single column tile: W_pos resident for the whole kernel; 1-D grid over
        # batch rows so megacore has a >=2-tile parallel axis whenever B > TB.
        grid = (n_row,)
        in_specs = [pl.BlockSpec((TB, TC), lambda b: (b, 0)),
                    pl.BlockSpec((1, TC), lambda b: (0, 0))]
        out_specs = pl.BlockSpec((TB, TC), lambda b: (b, 0))
        dims = ("parallel",)
    else:
        # Column axis outer, batch inner: the W_pos block index is constant across
        # consecutive inner steps, so Pallas skips re-DMA'ing it per batch tile.
        grid = (n_col, n_row)
        in_specs = [pl.BlockSpec((TB, TC), lambda c, b: (b, c)),
                    pl.BlockSpec((1, TC), lambda c, b: (0, c))]
        out_specs = pl.BlockSpec((TB, TC), lambda c, b: (b, c))
        dims = ("parallel", "parallel")

    # Double-buffered footprint: 2*x + 2*out + 2*w tiles, plus padding headroom.
    footprint = 2 * TB * TC * (x_item + o_item) + 2 * TC * w_item
    vmem_limit = int(min(48 << 20, max(32 << 20, int(footprint * 1.25) + (2 << 20))))

    out2 = pl.pallas_call(
        _pos_embed_kernel,
        out_shape=jax.ShapeDtypeStruct((B, F), out_dtype),
        grid_spec=pl.GridSpec(grid=grid, in_specs=in_specs, out_specs=out_specs),
        compiler_params=pltpu.CompilerParams(
            dimension_semantics=dims,
            vmem_limit_bytes=vmem_limit,
        ),
        # NOTE: callers that donate x could add input_output_aliases={0: 0} to drop
        # the separate output allocation; left off here since x is not donated.
    )(x2, w2)
    return out2.reshape(x.shape)


if __name__ == "__main__":
    # Shapes implied by the module: batch=2, seq=8, d_model=32, max_ctx=16.
    B, S, D, MAX_CTX = 2, 8, 32, 16

    key = jax.random.PRNGKey(0)
    kx, kw = jax.random.split(key)

    x = jax.random.normal(kx, (B, S, D), dtype=jnp.float32)
    # Matches nn.Parameter(randn(max_ctx, d_model) / sqrt(d_model)).
    w_pos = jax.random.normal(kw, (MAX_CTX, D), dtype=jnp.float32) / np.sqrt(D)

    out = jax.block_until_ready(pos_embed(x, w_pos))

    # Reference check against plain JAX semantics of x + W_pos[:S].
    ref = x + w_pos[:S]
    np.testing.assert_allclose(np.asarray(out), np.asarray(ref), rtol=1e-6, atol=1e-6)

    print("KERNEL_OK")
</pallas_src>

<mosaic_0001>
module attributes {stable_mosaic.version = 11 : i64} {
  func.func @_pos_embed_kernel(%arg0: i32, %arg1: memref<2x256xf32, #tpu.memory_space<vmem>>, %arg2: memref<1x256xf32, #tpu.memory_space<vmem>>, %arg3: memref<2x256xf32, #tpu.memory_space<vmem>>) attributes {dimension_semantics = [#tpu.dimension_semantics<parallel>], iteration_bounds = array<i64: 1>, scalar_prefetch = 0 : i64, scratch_operands = 0 : i64, tpu.core_type = #tpu.core_type<tc>, window_params = [{transform_indices = @transform_0, window_bounds = array<i64: 2, 256>}, {pipeline_mode = #tpu.pipeline_mode<synchronous>, transform_indices = @transform_1, window_bounds = array<i64: 1, 256>}, {transform_indices = @transform_2, window_bounds = array<i64: 2, 256>}]} {
    %c0 = arith.constant 0 : index
    %c0_0 = arith.constant 0 : index
    %0 = vector.load %arg1[%c0, %c0_0] : memref<2x256xf32, #tpu.memory_space<vmem>>, vector<2x256xf32>
    %c0_1 = arith.constant 0 : index
    %c0_2 = arith.constant 0 : index
    %1 = vector.load %arg2[%c0_1, %c0_2] : memref<1x256xf32, #tpu.memory_space<vmem>>, vector<1x256xf32>
    %2 = vector.broadcast %1 : vector<1x256xf32> to vector<2x256xf32>
    %3 = arith.addf %0, %2 : vector<2x256xf32>
    %c0_3 = arith.constant 0 : index
    %c0_4 = arith.constant 0 : index
    %4 = vector.load %arg3[%c0_3, %c0_4] : memref<2x256xf32, #tpu.memory_space<vmem>>, vector<2x256xf32>
    tpu.vector_store %arg3[%c0_3, %c0_4], %3 {strides = array<i32>} : memref<2x256xf32, #tpu.memory_space<vmem>>, vector<2x256xf32>,
    return
  }
  func.func @transform_0(%arg0: i32) -> (i32, i32) {
    %c0_i32 = arith.constant 0 : i32
    %c0_i32_0 = arith.constant 0 : i32
    return %arg0, %c0_i32 : i32, i32
  }
  func.func @transform_1(%arg0: i32) -> (i32, i32) {
    %c0_i32 = arith.constant 0 : i32
    %c0_i32_0 = arith.constant 0 : i32
    %c0_i32_1 = arith.constant 0 : i32
    return %c0_i32, %c0_i32_0 : i32, i32
  }
  func.func @transform_2(%arg0: i32) -> (i32, i32) {
    %c0_i32 = arith.constant 0 : i32
    %c0_i32_0 = arith.constant 0 : i32
    return %arg0, %c0_i32 : i32, i32
  }
}

</mosaic_0001>

<llo_original>
// kernel: pos_embed.1
$region0: #{pos_embed.1}
  #allocation0 [shape = 'u32[]', space=smem, size = 0x4, offset = 0x4, fixed_abs, tag = 'smem constant byte address 0x4 - core index']
  #allocation1 [shape = 'u32[144,128]{1,0:T(1,128)}', space=vmem, size = 0x12000, scoped, tag = 'internal scratch']
  %s0 = inlined_call_operand.vmem [shape: f32[2,256], index: 0, kind: input, shape index: {}]
  %s1 = inlined_call_operand.vmem [shape: f32[1,256], index: 1, kind: input, shape index: {}]
  %s2 = inlined_call_operand.vmem [shape: f32[2,256], index: 2, kind: output, shape index: {}]
  %s3 = sld [smem:[#allocation0]]
  $region18: #{pos_embed.1} parent=0
    _
  %s5 = ssub.s32 1, %s3
  %s6 = scalar_select 0, %s5, %s3
  // Predicated region
  $region2: #{pos_embed.1} parent=0 // pred_check
    _
  $region3: #{pos_embed.1} parent=0 // pred_check_branch
    %8 = sbr.rel (0) target = $region5
  $region4: #{pos_embed.1} parent=0 // pred_region
    _
  $region5: #{pos_embed.1} parent=0 // pred_fallthru
    _
  // Predicated region
  $region6: #{pos_embed.1} parent=0 // pred_check
    _
  $region7: #{pos_embed.1} parent=0 // pred_check_branch
    %10 = sbr.rel (0) target = $region9
  $region8: #{pos_embed.1} parent=0 // pred_region
    _
  $region9: #{pos_embed.1} parent=0 // pred_fallthru
    _
  %v11 = vld [vmem:[%s0] sm:$0xf]
  %v12 = vld [vmem:[%s1] sm:$0x3]
  %v14 = vlaneseq
  %v15 = vshrl.u32 %v14, 7
  %v16 = vsub.s32 0, %v15
  %v17 = vrot.slane %v12, %v16
  %v18 = vlaneseq
  %v19 = vshrl.u32 %v18, 7
  %v20 = vsub.s32 1, %v19
  %v21 = vrot.slane %v12, %v20
  %v22 = vcombine.low %v17, %v21
  %v24 = vunpack.c.l.s4 1983009808
  %v25 = vunpack.c.0.s8 %v24
  %v26 = vlaneseq
  %v27 = vshrl.u32 %v26, 7
  %v28 = vsub.s32 %v25, %v27
  %v29 = vrot.slane %v22, %v28
  %v31 = vadd.f32 %v11, %v29
  %32 = vst [vmem:[%s2] sm:$0xf] %v31
  // Predicated region
  $region10: #{pos_embed.1} parent=0 // pred_check
    _
  $region11: #{pos_embed.1} parent=0 // pred_check_branch
    %34 = sbr.rel (0) target = $region13
  $region12: #{pos_embed.1} parent=0 // pred_region
    _
  $region13: #{pos_embed.1} parent=0 // pred_fallthru
    _
  // Predicated region
  $region14: #{pos_embed.1} parent=0 // pred_check
    _
  $region15: #{pos_embed.1} parent=0 // pred_check_branch
    %36 = sbr.rel (0) target = $region17
  $region16: #{pos_embed.1} parent=0 // pred_region
    _
  $region17: #{pos_embed.1} parent=0 // pred_fallthru
    _

</llo_original>
